<compile_context>
chip_gen: v7x
topology: tpu7x:2x2x1
jax: 0.10.0
libtpu: 0.0.40
codegen_flags: <defaults>
</compile_context>

<pallas_src>
import math

import jax
import jax.numpy as jnp
from jax.experimental import pallas as pl
from jax.experimental.pallas import tpu as pltpu


_TARGET_BLOCK_BYTES = 4 << 20   # ~4 MiB out block per grid step (review: 3-4 MiB)
_VMEM_LIMIT_BYTES = 32 << 20    # double-buffered live set <= ~24 MiB; safe on
                                # v5e/v6e (128 MiB phys) and v7x (64 MiB phys)


def _cdiv(a, b):
    return -(-a // b)


def _choose_tiles(n_img, chw, itemsize, target_bytes=_TARGET_BLOCK_BYTES):
    """Pick (tn rows, ck lanes): ck divides chw, ck % 128 == 0, tn*ck ~ target."""
    rmult = 8 * max(1, 4 // itemsize)        # sublane tile: 8 f32 / 16 bf16 / 32 i8
    row_quota = n_img if n_img < rmult else rmult
    m = chw // 128

    # Widest column tile (divisor of chw, multiple of 128) such that a block of
    # `row_quota` rows fits the byte budget -> long contiguous DMA rows.
    ck = 128
    for d in range(m, 0, -1):
        if m % d == 0 and row_quota * (128 * d) * itemsize <= target_bytes:
            ck = 128 * d
            break

    # Rows: fill the remaining budget (multiple of the sublane tile; a ragged
    # tail is handled by a cdiv grid with clipped boundary blocks).
    if n_img < rmult:
        tn = n_img                            # == full dim (always layout-legal)
    else:
        tn = max(rmult, (target_bytes // (ck * itemsize)) // rmult * rmult)
        tn = min(tn, (n_img // rmult) * rmult)

    # v7x megacore: prefer >= 2 blocks on the parallel (row/col) grid axes.
    if _cdiv(n_img, tn) * (chw // ck) < 2:
        ck2 = 0
        for d in range(m // 2, 0, -1):
            if m % d == 0:
                ck2 = 128 * d
                break
        if ck2:
            ck = ck2
        elif tn > rmult:
            tn = max(rmult, ((tn // 2 + rmult - 1) // rmult) * rmult)
    return tn, ck


# ---------------------------------------------------------------------------
# Kernels
# ---------------------------------------------------------------------------
def _shared_anchor_kernel(a_rows_ref, x_ref, anc_ref, out_ref):
    """Inference path: one anchor row shared by all samples of the block.

    x_ref  : (tn, ck)     column block of the input batch
    anc_ref: (1, 1, ck)   column block of one anchor row (picked via prefetch)
    out_ref: (1, tn, ck)  refs half (h==0) or diff half (h==1) of the rows
    """
    del a_rows_ref                            # only consumed by the index_maps
    h = pl.program_id(3)
    anc = anc_ref[0]                          # (1, ck)

    @pl.when(h == 0)                          # refs = corruption(A) = A (identity)
    def _():
        out_ref[0, :, :] = jnp.broadcast_to(anc, out_ref.shape[1:])

    @pl.when(h == 1)                          # diff = x - A (anchor broadcasts)
    def _():
        out_ref[0, :, :] = x_ref[...] - anc


def _per_row_anchor_kernel(x_ref, anc_ref, out_ref):
    """Training path: per-row anchors; output rows come in two groups.

    g == 0 : rows anchored on A_rand[i] -> [A_rand[i], x[i] - A_rand[i]]
    g == 1 : rows anchored on x[i]      -> [x[i],      0              ]
    """
    g = pl.program_id(2)
    h = pl.program_id(3)

    @pl.when((g == 0) & (h == 0))
    def _():
        out_ref[0, :, :] = anc_ref[...]

    @pl.when((g == 0) & (h == 1))
    def _():
        out_ref[0, :, :] = x_ref[...] - anc_ref[...]

    @pl.when((g == 1) & (h == 0))
    def _():
        out_ref[0, :, :] = x_ref[...]

    @pl.when((g == 1) & (h == 1))
    def _():
        out_ref[0, :, :] = jnp.zeros(out_ref.shape[1:], out_ref.dtype)


# ---------------------------------------------------------------------------
# pallas_call wrappers
# ---------------------------------------------------------------------------
def _shared_anchor_pallas(xf, pool3, a_rows, n_anchors, tn, ck):
    """Inference: out[a, i] = [pool[a_rows[a]], x[i] - pool[a_rows[a]]]."""
    n_img, chw = xf.shape
    nb_rows = _cdiv(n_img, tn)
    nb_c = chw // ck
    dtype = xf.dtype
    itemsize = jnp.dtype(dtype).itemsize

    # Grid order (rows, cols, anchor, half): x block resident across the inner
    # (anchor, half) sweep -> x read from HBM exactly once.
    grid = (nb_rows, nb_c, n_anchors, 2)

    # NOTE: pipeline_mode=pl.Buffered(3) on x_spec only if a trace shows
    # exposed input DMA after enlarging blocks (sweep, don't assume).
    x_spec = pl.BlockSpec((tn, ck), lambda rb, cb, a, h, ar: (rb, cb))
    anc_spec = pl.BlockSpec((1, 1, ck), lambda rb, cb, a, h, ar: (ar[a], 0, cb))
    out_spec = pl.BlockSpec((1, tn, ck),
                            lambda rb, cb, a, h, ar: (a, rb, h * nb_c + cb))

    out_rows = n_anchors * n_img
    cost = pl.CostEstimate(
        flops=int(out_rows * chw),
        transcendentals=0,
        bytes_accessed=int((n_img + n_anchors * nb_rows) * chw * itemsize
                           + out_rows * 2 * chw * itemsize))

    out = pl.pallas_call(
        _shared_anchor_kernel,
        out_shape=jax.ShapeDtypeStruct((n_anchors, n_img, 2 * chw), dtype),
        grid_spec=pltpu.PrefetchScalarGridSpec(
            num_scalar_prefetch=1,
            grid=grid,
            in_specs=[x_spec, anc_spec],
            out_specs=out_spec),
        compiler_params=pltpu.CompilerParams(
            dimension_semantics=("parallel", "parallel", "arbitrary", "arbitrary"),
            vmem_limit_bytes=_VMEM_LIMIT_BYTES),
        cost_estimate=cost,
    )(a_rows, xf, pool3)
    return out.reshape(out_rows, 2 * chw)


def _per_row_anchor_pallas(xf, a_rand, tn, ck):
    """Training: rows 0..n-1 anchored on A_rand, rows n..2n-1 anchored on x."""
    n_img, chw = xf.shape
    nb_rows = _cdiv(n_img, tn)
    nb_c = chw // ck
    dtype = xf.dtype
    itemsize = jnp.dtype(dtype).itemsize

    grid = (nb_rows, nb_c, 2, 2)

    x_spec = pl.BlockSpec((tn, ck), lambda rb, cb, g, h: (rb, cb))
    # A_rand block index is constant across the inner (g, h) sweep, so the
    # (unused) g==1 fetches are skipped by the pipeline (same block as g==0).
    a_spec = pl.BlockSpec((tn, ck), lambda rb, cb, g, h: (rb, cb))
    out_spec = pl.BlockSpec((1, tn, ck),
                            lambda rb, cb, g, h: (g, rb, h * nb_c + cb))

    cost = pl.CostEstimate(
        flops=int(n_img * chw),
        transcendentals=0,
        bytes_accessed=int(2 * n_img * chw * itemsize          # read x, A_rand
                           + 4 * n_img * chw * itemsize))      # write 2n rows

    out = pl.pallas_call(
        _per_row_anchor_kernel,
        out_shape=jax.ShapeDtypeStruct((2, n_img, 2 * chw), dtype),
        grid_spec=pltpu.PrefetchScalarGridSpec(
            num_scalar_prefetch=0,
            grid=grid,
            in_specs=[x_spec, a_spec],
            out_specs=out_spec),
        compiler_params=pltpu.CompilerParams(
            dimension_semantics=("parallel", "parallel", "arbitrary", "arbitrary"),
            vmem_limit_bytes=_VMEM_LIMIT_BYTES),
        cost_estimate=cost,
    )(xf, a_rand)
    return out.reshape(2 * n_img, 2 * chw)


# ---------------------------------------------------------------------------
# Public API: JAX/Pallas port of deltaUQ.create_anchored_batch
# ---------------------------------------------------------------------------
def create_anchored_batch(x, anchors=None, n_anchors=1, training=False,
                          key=None):
    """Matches the PyTorch semantics (corrupt=False; corruption is identity).

    torch's global-RNG calls (randperm / randint) are replaced by
    deterministic jax.random calls driven by `key`.
    """
    if key is None:
        # TODO(synk): PyTorch uses the global RNG; a fixed default key makes
        # anchor selection deterministic across calls.
        key = jax.random.PRNGKey(0)
    k_shuf, k_sel = jax.random.split(key)

    n_img = x.shape[0]
    feat_shape = tuple(x.shape[1:])
    chw = int(math.prod(feat_shape))
    dtype = x.dtype
    itemsize = jnp.dtype(dtype).itemsize
    xf = x.reshape(n_img, chw)

    # anchors=None: anchors = x[randperm(n_img)].  Never materialised — the
    # permutation is composed into the gather / prefetch indices instead.
    if anchors is None:
        anchor_perm = jax.random.permutation(k_shuf, n_img)
        pool_f = xf
        n_av = n_img
    else:
        anchor_perm = None
        pool_f = anchors.reshape(anchors.shape[0], chw)
        n_av = anchors.shape[0]

    if training:
        if n_anchors != 1:
            # TODO(synk): the reference PyTorch training path is only
            # shape-consistent for n_anchors == 1 (A vs x.tile mismatch).
            raise ValueError("training path requires n_anchors == 1")
        idx = jax.random.randint(k_sel, (n_img * n_anchors,), 0, n_av)
        a_idx = anchor_perm[idx] if anchors is None else idx
        a_rand = pool_f[a_idx]                      # XLA gather, (n_img, chw)
        # TODO(synk): the gather could also be fused in-kernel with per-row
        # DMAs driven by a scalar-prefetched index array.
        if chw % 128 != 0:
            # TODO(synk): unaligned feature size — silent XLA fallback (2-3x
            # extra HBM traffic).
            flat = jnp.concatenate([
                jnp.concatenate([a_rand, xf - a_rand], axis=1),
                jnp.concatenate([xf, jnp.zeros_like(xf)], axis=1)], axis=0)
        else:
            tn, ck = _choose_tiles(n_img, chw, itemsize)
            flat = _per_row_anchor_pallas(xf, a_rand, tn, ck)
    else:
        perm = jax.random.permutation(k_sel, n_anchors)
        a_rows = (anchor_perm[perm] if anchors is None else perm)
        a_rows = a_rows.astype(jnp.int32)
        if chw % 128 != 0:
            # TODO(synk): unaligned feature size — silent XLA fallback.
            A = pool_f[a_rows]
            A_rep = jnp.repeat(A, n_img, axis=0)
            flat = jnp.concatenate(
                [A_rep, jnp.tile(xf, (n_anchors, 1)) - A_rep], axis=1)
        else:
            tn, ck = _choose_tiles(n_img, chw, itemsize)
            pool3 = pool_f.reshape(pool_f.shape[0], 1, chw)
            flat = _shared_anchor_pallas(xf, pool3, a_rows, n_anchors, tn, ck)

    out_feat = (2 * feat_shape[0],) + feat_shape[1:] if feat_shape else (2,)
    return flat.reshape((flat.shape[0],) + out_feat)


# ---------------------------------------------------------------------------
# Pure-jnp references (identical jax.random usage) for correctness checks
# ---------------------------------------------------------------------------
def _ref_eval(x, n_anchors, key):
    k_shuf, k_sel = jax.random.split(key)
    n_img = x.shape[0]
    anchors = x[jax.random.permutation(k_shuf, n_img)]
    perm = jax.random.permutation(k_sel, n_anchors)
    A = jnp.repeat(anchors[perm], n_img, axis=0)
    x_rep = jnp.tile(x, (n_anchors, 1, 1, 1))
    return jnp.concatenate([A, x_rep - A], axis=1)


def _ref_train(x, key):
    k_shuf, k_sel = jax.random.split(key)
    n_img = x.shape[0]
    anchors = x[jax.random.permutation(k_shuf, n_img)]
    idx = jax.random.randint(k_sel, (n_img * 1,), 0, anchors.shape[0])
    A = jnp.concatenate([anchors[idx], x], axis=0)
    x2 = jnp.concatenate([x, x], axis=0)
    return jnp.concatenate([A, x2 - A], axis=1)


if __name__ == "__main__":
    key = jax.random.PRNGKey(0)
    k_x, k_rng, k_x2 = jax.random.split(key, 3)

    B, C, H, W = 2, 4, 16, 16            # C*H*W = 1024 (lane-dense)
    n_anchors = 2
    x = jax.random.normal(k_x, (B, C, H, W), dtype=jnp.float32)

    # 1) Inference path (hot path): fully fused, no A / x_rep in HBM.
    batch = create_anchored_batch(x, anchors=None, n_anchors=n_anchors,
                                  training=False, key=k_rng)
    batch = jax.block_until_ready(batch)
    assert batch.shape == (n_anchors * B, 2 * C, H, W), batch.shape
    ref = _ref_eval(x, n_anchors, k_rng)
    assert jnp.allclose(batch, ref, atol=1e-6), "eval path mismatch vs jnp ref"

    # 2) Training path (now a blocked per-row-anchor kernel).
    batch_tr = create_anchored_batch(x, anchors=None, n_anchors=1,
                                     training=True, key=k_rng)
    batch_tr = jax.block_until_ready(batch_tr)
    assert batch_tr.shape == (2 * B, 2 * C, H, W), batch_tr.shape
    ref_tr = _ref_train(x, k_rng)
    assert jnp.allclose(batch_tr, ref_tr, atol=1e-6), "train path mismatch"

    # 3) Explicit fixed anchors at inference (recommended usage per docstring).
    anchors = jax.random.normal(jax.random.PRNGKey(7), (3, C, H, W),
                                dtype=jnp.float32)
    batch_a = create_anchored_batch(x, anchors=anchors, n_anchors=2,
                                    training=False, key=k_rng)
    batch_a = jax.block_until_ready(batch_a)
    assert batch_a.shape == (2 * B, 2 * C, H, W), batch_a.shape
    _, k_sel = jax.random.split(k_rng)
    perm = jax.random.permutation(k_sel, 2)
    A = jnp.repeat(anchors[perm], B, axis=0)
    ref_a = jnp.concatenate([A, jnp.tile(x, (2, 1, 1, 1)) - A], axis=1)
    assert jnp.allclose(batch_a, ref_a, atol=1e-6), "explicit anchors mismatch"

    # 4) Ragged batch (n_img not a multiple of the sublane tile) stays fused.
    B2 = 10
    x2 = jax.random.normal(k_x2, (B2, C, H, W), dtype=jnp.float32)
    batch_r = create_anchored_batch(x2, anchors=None, n_anchors=3,
                                    training=False, key=k_rng)
    batch_r = jax.block_until_ready(batch_r)
    assert batch_r.shape == (3 * B2, 2 * C, H, W), batch_r.shape
    ref_r = _ref_eval(x2, 3, k_rng)
    assert jnp.allclose(batch_r, ref_r, atol=1e-6), "ragged eval mismatch"

    print("KERNEL_OK")
</pallas_src>

<mosaic_0001>
module attributes {stable_mosaic.version = 11 : i64} {
  func.func @_shared_anchor_kernel(%arg0: i32, %arg1: i32, %arg2: i32, %arg3: i32, %arg4: memref<2xi32, #tpu.memory_space<smem>>, %arg5: memref<2x512xf32, #tpu.memory_space<vmem>>, %arg6: memref<1x1x512xf32, #tpu.memory_space<vmem>>, %arg7: memref<1x2x512xf32, #tpu.memory_space<vmem>>) attributes {dimension_semantics = [#tpu.dimension_semantics<parallel>, #tpu.dimension_semantics<parallel>, #tpu.dimension_semantics<arbitrary>, #tpu.dimension_semantics<arbitrary>], iteration_bounds = array<i64: 1, 2, 2, 2>, scalar_prefetch = 1 : i64, scratch_operands = 0 : i64, tpu.core_type = #tpu.core_type<tc>, window_params = [{transform_indices = @transform_0, window_bounds = array<i64: 2, 512>}, {transform_indices = @transform_1, window_bounds = array<i64: 1, 1, 512>}, {transform_indices = @transform_2, window_bounds = array<i64: 1, 2, 512>}]} {
    %c0 = arith.constant 0 : index
    %c0_0 = arith.constant 0 : index
    %c0_1 = arith.constant 0 : index
    %0 = vector.load %arg6[%c0, %c0_0, %c0_1] : memref<1x1x512xf32, #tpu.memory_space<vmem>>, vector<1x1x512xf32>
    %1 = vector.shape_cast %0 : vector<1x1x512xf32> to vector<1x512xf32>
    %c0_i32 = arith.constant 0 : i32
    %2 = arith.cmpi eq, %arg3, %c0_i32 : i32
    %3 = arith.extui %2 : i1 to i32
    %c0_i32_2 = arith.constant 0 : i32
    %4 = arith.cmpi ne, %3, %c0_i32_2 : i32
    scf.if %4 {
      %8 = vector.shape_cast %1 : vector<1x512xf32> to vector<1x512xf32>
      %9 = vector.broadcast %8 : vector<1x512xf32> to vector<2x512xf32>
      %c0_4 = arith.constant 0 : index
      %c0_5 = arith.constant 0 : index
      %c0_6 = arith.constant 0 : index
      %10 = vector.load %arg7[%c0_4, %c0_5, %c0_6] : memref<1x2x512xf32, #tpu.memory_space<vmem>>, vector<1x2x512xf32>
      %11 = vector.shape_cast %10 : vector<1x2x512xf32> to vector<2x512xf32>
      %12 = vector.shape_cast %9 : vector<2x512xf32> to vector<1x2x512xf32>
      tpu.vector_store %arg7[%c0_4, %c0_5, %c0_6], %12 {strides = array<i32>} : memref<1x2x512xf32, #tpu.memory_space<vmem>>, vector<1x2x512xf32>,
    } else {
    }
    %c1_i32 = arith.constant 1 : i32
    %5 = arith.cmpi eq, %arg3, %c1_i32 : i32
    %6 = arith.extui %5 : i1 to i32
    %c0_i32_3 = arith.constant 0 : i32
    %7 = arith.cmpi ne, %6, %c0_i32_3 : i32
    scf.if %7 {
      %c0_4 = arith.constant 0 : index
      %c0_5 = arith.constant 0 : index
      %8 = vector.load %arg5[%c0_4, %c0_5] : memref<2x512xf32, #tpu.memory_space<vmem>>, vector<2x512xf32>
      %9 = vector.broadcast %1 : vector<1x512xf32> to vector<2x512xf32>
      %10 = arith.subf %8, %9 : vector<2x512xf32>
      %c0_6 = arith.constant 0 : index
      %c0_7 = arith.constant 0 : index
      %c0_8 = arith.constant 0 : index
      %11 = vector.load %arg7[%c0_6, %c0_7, %c0_8] : memref<1x2x512xf32, #tpu.memory_space<vmem>>, vector<1x2x512xf32>
      %12 = vector.shape_cast %11 : vector<1x2x512xf32> to vector<2x512xf32>
      %13 = vector.shape_cast %10 : vector<2x512xf32> to vector<1x2x512xf32>
      tpu.vector_store %arg7[%c0_6, %c0_7, %c0_8], %13 {strides = array<i32>} : memref<1x2x512xf32, #tpu.memory_space<vmem>>, vector<1x2x512xf32>,
    } else {
    }
    return
  }
  func.func @transform_0(%arg0: i32, %arg1: i32, %arg2: i32, %arg3: i32, %arg4: memref<2xi32, #tpu.memory_space<smem>>) -> (i32, i32) {
    %c0_i32 = arith.constant 0 : i32
    return %arg0, %arg1 : i32, i32
  }
  func.func @transform_1(%arg0: i32, %arg1: i32, %arg2: i32, %arg3: i32, %arg4: memref<2xi32, #tpu.memory_space<smem>>) -> (i32, i32, i32) {
    %0 = arith.index_cast %arg2 : i32 to index
    %1 = memref.load %arg4[%0] : memref<2xi32, #tpu.memory_space<smem>>
    %c0_i32 = arith.constant 0 : i32
    %c0_i32_0 = arith.constant 0 : i32
    return %1, %c0_i32, %arg1 : i32, i32, i32
  }
  func.func @transform_2(%arg0: i32, %arg1: i32, %arg2: i32, %arg3: i32, %arg4: memref<2xi32, #tpu.memory_space<smem>>) -> (i32, i32, i32) {
    %c2_i32 = arith.constant 2 : i32
    %0 = arith.muli %arg3, %c2_i32 : i32
    %1 = arith.addi %0, %arg1 : i32
    %c0_i32 = arith.constant 0 : i32
    return %arg2, %arg0, %1 : i32, i32, i32
  }
}

</mosaic_0001>

<llo_original>
// kernel: tpu_custom_call.1
$region0: #{tpu_custom_call.1}
  #allocation0 [shape = 'u32[]', space=smem, size = 0x4, offset = 0x4, fixed_abs, tag = 'smem constant byte address 0x4 - core index']
  #allocation1 [shape = 'u32[144,128]{1,0:T(1,128)}', space=vmem, size = 0x12000, scoped, tag = 'internal scratch']
  #allocation2 [shape = 's32[1]{0}', space=sflag, size = 0x4, scoped, tag = 'scoped memory for tpu_custom_call.1']
  #allocation3 [shape = 'u8[512]{0}', space=smem, size = 0x200, scoped, tag = 'prefetched SMEM operand 0']
  %s0 = inlined_call_operand.hbm [shape: s32[2], index: 0, kind: input, shape index: {}]
  %s1 = inlined_call_operand.hbm [shape: f32[2,1024], index: 1, kind: input, shape index: {}]
  %s2 = inlined_call_operand.hbm [shape: f32[2,1,1024], index: 2, kind: input, shape index: {}]
  %s3 = inlined_call_operand.hbm [shape: f32[2,2,2048], index: 3, kind: output, shape index: {}]
  %s4 = sld [smem:[#allocation0]]
  $region57: #{tpu_custom_call.1} parent=0
    _
  %s6 = ssub.s32 1, %s4
  %s7 = scalar_select 0, %s6, %s4
  %9 = dma.hbm_to_smem %s0, 16, [#allocation3], [#allocation2]
  %10 = dma.done [#allocation2], 16
  %11 = sfence
  $region1: #{tpu_custom_call.1} parent=0
    #allocation4 [shape = 'u8[8192]{0}', space=vmem, size = 0x2000, scoped, tag = 'input window, operand 1']
    #allocation5 [shape = 's32[2]{0}', space=sflag, size = 0x8, scoped, tag = 'scoped memory for tpu_custom_call.1']
    #allocation6 [shape = 's32[2]{0}', space=sflag, size = 0x8, scoped, tag = 'scoped memory for tpu_custom_call.1']
    #allocation7 [shape = 'u8[4096]{0}', space=vmem, size = 0x1000, scoped, tag = 'input window, operand 2']
    #allocation8 [shape = 's32[2]{0}', space=sflag, size = 0x8, scoped, tag = 'scoped memory for tpu_custom_call.1']
    #allocation9 [shape = 'u8[8192]{0}', space=vmem, size = 0x2000, scoped, tag = 'output window, operand 0']
    %12 = vsyncpa [#allocation5], 0
    %s13 = scalar_lea.sflag [#allocation5], 1
    %14 = vsyncpa %s13, 0
    %15 = vsyncpa [#allocation8], 0
    %s16 = scalar_lea.sflag [#allocation8], 1
    %17 = vsyncpa %s16, 0
    %18 = vsyncpa [#allocation6], 0
    %s19 = scalar_lea.sflag [#allocation6], 1
    %20 = vsyncpa %s19, 0
    loop: start=0, step=1, limit=10
    $region2: #{tpu_custom_call.1} parent=1 // loop_pre_header
      _
    $region3: #{tpu_custom_call.1} parent=1 // loop_header
      %s22 = sphi 0, %s26
      %p23 = scmp.ge.s32.totalorder %s22, 10
      %s29 = sphi 0, %s55
      %s30 = sphi 0, %s51
      %s31 = sphi 0, %s47
      %s32 = sphi 0, %s43
      %s33 = sphi 0, %s29
      %s34 = sphi 0, %s30
      %s35 = sphi 0, %s31
      %s36 = sphi 0, %s32
      %s37 = sphi 0, %s33
      %s38 = sphi 0, %s34
      %s39 = sphi 0, %s35
      %s40 = sphi 0, %s36
      %s60 = sphi 0, %s62
      %s63 = sphi 0, %s60
      %s64 = sphi 0, %s63
      %s80 = sphi 0, %s64
      %s90 = sphi 0, %s92
      %s93 = sphi 0, %s90
      %s94 = sphi 0, %s93
      %s110 = sphi 0, %s94
      %s124 = sphi 0, %s126
      %s127 = sphi 0, %s124
      %s128 = sphi 0, %s127
      %s144 = sphi 0, %s128
    $region4: #{tpu_custom_call.1} parent=1 // loop_header_branch
      %25 = sbr.rel (%p23) target = $region8
    $region5: #{tpu_custom_call.1} parent=1 // loop_body
      %s27 = ssub.s32 %s22, 1
      %s28 = ssub.s32 %s22, 2
      %s41 = sadd.s32 1, %s32
      %p42 = scmp.ge.s32.totalorder %s41, 2
      %s43 = scalar_select %p42, 0, %s41
      %s44 = sadd.s32 1, %s31
      %s45 = scalar_select %p42, %s44, %s31
      %p46 = scmp.ge.s32.totalorder %s45, 2
      %s47 = scalar_select %p46, 0, %s45
      %s48 = sadd.s32 1, %s30
      %s49 = scalar_select %p46, %s48, %s30
      %p50 = scmp.ge.s32.totalorder %s49, 2
      %s51 = scalar_select %p50, 0, %s49
      %s52 = sadd.s32 1, %s29
      %s53 = scalar_select %p50, %s52, %s29
      %p54 = scmp.ge.s32.totalorder %s53, 1
      %s55 = scalar_select %p54, 0, %s53
      %s56 = ssub.s32 %s29, %s55
      %s57 = ssub.s32 %s30, %s51
      %s58 = sor.u32 %s56, %s57
      %p59 = scmp.eq.s32.totalorder %s58, 0
      %s61 = sadd.s32 %s60, 1
      %s62 = scalar_select %p59, %s60, %s61
      %p65 = pneg %p59
      %p66 = scmp.eq.s32.totalorder %s22, 7
      %p67 = por %p65, %p66
      %p68 = scmp.ne.s32.totalorder %s60, %s63
      %p69 = scmp.eq.s32.totalorder %s22, 0
      %p70 = por %p68, %p69
      %p71 = scmp.ne.s32.totalorder %s60, %s63
      %p72 = scmp.eq.s32.totalorder %s27, 7
      %p73 = por %p71, %p72
      %p74 = scmp.ne.s32.totalorder %s63, %s64
      %p75 = scmp.eq.s32.totalorder %s27, 0
      %p76 = por %p74, %p75
      %p77 = scmp.ne.s32.totalorder %s63, %s64
      %p78 = scmp.eq.s32.totalorder %s28, 7
      %p79 = por %p77, %p78
      %p81 = scmp.ne.s32.totalorder %s64, %s80
      %p82 = scmp.eq.s32.totalorder %s28, 0
      %p83 = por %p81, %p82
      %s84 = sld [smem:[#allocation3 + %s31]]
      %s85 = sld [smem:[#allocation3 + %s47]]
      %s86 = ssub.s32 %s84, %s85
      %s87 = ssub.s32 %s30, %s51
      %s88 = sor.u32 %s86, %s87
      %p89 = scmp.eq.s32.totalorder %s88, 0
      %s91 = sadd.s32 %s90, 1
      %s92 = scalar_select %p89, %s90, %s91
      %p95 = pneg %p89
      %p96 = scmp.eq.s32.totalorder %s22, 7
      %p97 = por %p95, %p96
      %p98 = scmp.ne.s32.totalorder %s90, %s93
      %p99 = scmp.eq.s32.totalorder %s22, 0
      %p100 = por %p98, %p99
      %p101 = scmp.ne.s32.totalorder %s90, %s93
      %p102 = scmp.eq.s32.totalorder %s27, 7
      %p103 = por %p101, %p102
      %p104 = scmp.ne.s32.totalorder %s93, %s94
      %p105 = scmp.eq.s32.totalorder %s27, 0
      %p106 = por %p104, %p105
      %p107 = scmp.ne.s32.totalorder %s93, %s94
      %p108 = scmp.eq.s32.totalorder %s28, 7
      %p109 = por %p107, %p108
      %p111 = scmp.ne.s32.totalorder %s94, %s110
      %p112 = scmp.eq.s32.totalorder %s28, 0
      %p113 = por %p111, %p112
      %s114 = smul.u32 %s32, 2
      %s115 = sadd.s32 %s114, %s30
      %s116 = smul.u32 %s43, 2
      %s117 = sadd.s32 %s116, %s51
      %s118 = ssub.s32 %s31, %s47
      %s119 = ssub.s32 %s29, %s55
      %s120 = sor.u32 %s118, %s119
      %s121 = ssub.s32 %s115, %s117
      %s122 = sor.u32 %s120, %s121
      %p123 = scmp.eq.s32.totalorder %s122, 0
      %s125 = sadd.s32 %s124, 1
      %s126 = scalar_select %p123, %s124, %s125
      %p129 = pneg %p123
      %p130 = scmp.eq.s32.totalorder %s22, 7
      %p131 = por %p129, %p130
      %p132 = scmp.ne.s32.totalorder %s124, %s127
      %p133 = scmp.eq.s32.totalorder %s22, 0
      %p134 = por %p132, %p133
      %p135 = scmp.ne.s32.totalorder %s124, %s127
      %p136 = scmp.eq.s32.totalorder %s27, 7
      %p137 = por %p135, %p136
      %p138 = scmp.ne.s32.totalorder %s127, %s128
      %p139 = scmp.eq.s32.totalorder %s27, 0
      %p140 = por %p138, %p139
      %p141 = scmp.ne.s32.totalorder %s127, %s128
      %p142 = scmp.eq.s32.totalorder %s28, 7
      %p143 = por %p141, %p142
      %p145 = scmp.ne.s32.totalorder %s128, %s144
      %p146 = scmp.eq.s32.totalorder %s28, 0
      %p147 = por %p145, %p146
      %p148 = scmp.le.s32.totalorder 1, %s22
      %p149 = scmp.lt.s32.totalorder %s22, 9
      %p150 = pnand %p148, %p149
      %p151 = pneg %p150
      // Predicated region
      $region9: #{tpu_custom_call.1} parent=5 // pred_check
        _
      $region10: #{tpu_custom_call.1} parent=5 // pred_check_branch
        %153 = sbr.rel (%p150) target = $region12
      $region11: #{tpu_custom_call.1} parent=5 // pred_region
        %s154 = ssub.s32 %s22, 1
      $region12: #{tpu_custom_call.1} parent=5 // pred_fallthru
        _
      %p155 = scmp.lt.s32.totalorder %s22, 8
      // Predicated region
      $region13: #{tpu_custom_call.1} parent=5 // pred_check
        %p156 = pneg %p155
      $region14: #{tpu_custom_call.1} parent=5 // pred_check_branch
        %158 = sbr.rel (%p156) target = $region16
      $region15: #{tpu_custom_call.1} parent=5 // pred_region
        // Predicated region
        $region17: #{tpu_custom_call.1} parent=15 // pred_check
          %p159 = pneg %p70
        $region18: #{tpu_custom_call.1} parent=15 // pred_check_branch
          %161 = sbr.rel (%p159) target = $region20
        $region19: #{tpu_custom_call.1} parent=15 // pred_region
          %s162 = sand.u32 %s60, 1
          %s163 = scalar_lea.sflag [#allocation5], %s162
          %s164 = sand.u32 %s60, 1
          %s165 = smul.addr %s164, 8
          %s166 = scalar_lea.vmem [#allocation4], %s165
          %s167 = smul.u32 4, %s30
          %s169 = ssub.s32 128, 128
          %170 = vsyncadd %s163, %s169
          %s171 = smul.addr %s29, 8
          %s172 = sadd.s32 %s167, %s171
          %s173 = smul.addr %s172, 32
          %s174 = scalar_lea.hbm %s1, %s173
          %s176 = sshll.u32 %s166, 4
          %s177 = int_to_ptr.vmem [resolvable:$true] %s176
          %179 = dma.hbm_to_vmem [thread:$0]  %s174, 128, %s177, %s163
        $region20: #{tpu_custom_call.1} parent=15 // pred_fallthru
          _
        // Predicated region
        $region21: #{tpu_custom_call.1} parent=15 // pred_check
          %p180 = pneg %p100
        $region22: #{tpu_custom_call.1} parent=15 // pred_check_branch
          %182 = sbr.rel (%p180) target = $region24
        $region23: #{tpu_custom_call.1} parent=15 // pred_region
          %s183 = sand.u32 %s90, 1
          %s184 = scalar_lea.sflag [#allocation8], %s183
          %s185 = sand.u32 %s90, 1
          %s186 = smul.addr %s185, 4
          %s187 = scalar_lea.vmem [#allocation7], %s186
          %s188 = sld [smem:[#allocation3 + %s31]]
          %s189 = smul.u32 4, %s30
          %s191 = ssub.s32 64, 64
          %192 = vsyncadd %s184, %s191
          %s193 = smul.addr %s188, 8
          %s194 = sadd.s32 %s189, %s193
          %s195 = smul.addr %s194, 16
          %s196 = scalar_lea.hbm %s2, %s195
          %s198 = sshll.u32 %s187, 4
          %s199 = int_to_ptr.vmem [resolvable:$true] %s198
          %201 = dma.hbm_to_vmem [thread:$0]  %s196, 64, %s199, %s184
        $region24: #{tpu_custom_call.1} parent=15 // pred_fallthru
          _
      $region16: #{tpu_custom_call.1} parent=5 // pred_fallthru
        _
      %p202 = scmp.le.s32.totalorder 1, %s22
      %p203 = scmp.lt.s32.totalorder %s22, 9
      %p204 = pnand %p202, %p203
      %p205 = pneg %p204
      // Predicated region
      $region25: #{tpu_custom_call.1} parent=5 // pred_check
        _
      $region26: #{tpu_custom_call.1} parent=5 // pred_check_branch
        %207 = sbr.rel (%p204) target = $region28
      $region27: #{tpu_custom_call.1} parent=5 // pred_region
        %s208 = ssub.s32 %s22, 1
        %s209 = sand.u32 %s63, 1
        %s210 = scalar_lea.sflag [#allocation5], %s209
        %s211 = sand.u32 %s63, 1
        %s212 = smul.addr %s211, 8
        %s213 = scalar_lea.vmem [#allocation4], %s212
        // Predicated region
        $region29: #{tpu_custom_call.1} parent=27 // pred_check
          %p214 = pneg %p76
        $region30: #{tpu_custom_call.1} parent=27 // pred_check_branch
          %216 = sbr.rel (%p214) target = $region32
        $region31: #{tpu_custom_call.1} parent=27 // pred_region
          %217 = dma.done %s210, 128
        $region32: #{tpu_custom_call.1} parent=27 // pred_fallthru
          _
        %s218 = sand.u32 %s93, 1
        %s219 = scalar_lea.sflag [#allocation8], %s218
        %s220 = sand.u32 %s93, 1
        %s221 = smul.addr %s220, 4
        %s222 = scalar_lea.vmem [#allocation7], %s221
        // Predicated region
        $region33: #{tpu_custom_call.1} parent=27 // pred_check
          %p223 = pneg %p106
        $region34: #{tpu_custom_call.1} parent=27 // pred_check_branch
          %225 = sbr.rel (%p223) target = $region36
        $region35: #{tpu_custom_call.1} parent=27 // pred_region
          %226 = dma.done %s219, 64
        $region36: #{tpu_custom_call.1} parent=27 // pred_fallthru
          _
        %s227 = sand.u32 %s63, 1
        %s228 = scalar_lea.sflag [#allocation5], %s227
        %s229 = sand.u32 %s63, 1
        %s230 = smul.addr %s229, 8
        %s231 = scalar_lea.vmem [#allocation4], %s230
        %p232 = pneg %p76
        %p233 = pneg %p73
        %s234 = sand.u32 %s93, 1
        %s235 = scalar_lea.sflag [#allocation8], %s234
        %s236 = sand.u32 %s93, 1
        %s237 = smul.addr %s236, 4
        %s238 = scalar_lea.vmem [#allocation7], %s237
        %p239 = pneg %p106
        %p240 = pneg %p103
        %p241 = pneg %p140
        %p242 = pneg %p137
        %s243 = sand.u32 %s127, 1
        %s244 = scalar_lea.sflag [#allocation6], %s243
        %s245 = sand.u32 %s127, 1
        %s246 = smul.addr %s245, 8
        %s247 = scalar_lea.vmem [#allocation9], %s246
        %s248 = smul.u32 4, %s34
        %s249 = sld [smem:[#allocation3 + %s35]]
        %s250 = smul.u32 4, %s34
        %s251 = smul.u32 %s36, 2
        %s252 = sadd.s32 %s251, %s34
        %s253 = smul.u32 4, %s252
        %v254 = vld [vmem:[%s222] sm:$0xf]
        %p255 = scmp.eq.s32.totalorder %s36, 0
        // Predicated region
        $region37: #{tpu_custom_call.1} parent=27 // pred_check
          %p256 = pneg %p255
        $region38: #{tpu_custom_call.1} parent=27 // pred_check_branch
          %258 = sbr.rel (%p256) target = $region40
        $region39: #{tpu_custom_call.1} parent=27 // pred_region
          %v260 = vlaneseq
          %v261 = vshrl.u32 %v260, 7
          %v262 = vsub.s32 0, %v261
          %v263 = vrot.slane %v254, %v262
          %v264 = vlaneseq
          %v265 = vshrl.u32 %v264, 7
          %v266 = vsub.s32 1, %v265
          %v267 = vrot.slane %v254, %v266
          %v268 = vlaneseq
          %v269 = vshrl.u32 %v268, 7
          %v270 = vsub.s32 2, %v269
          %v271 = vrot.slane %v254, %v270
          %v272 = vlaneseq
          %v273 = vshrl.u32 %v272, 7
          %v274 = vsub.s32 3, %v273
          %v275 = vrot.slane %v254, %v274
          %v276 = vcombine.low %v263, %v267
          %v277 = vcombine.low %v271, %v275
          %v279 = vunpack.c.l.s4 1983009808
          %v280 = vunpack.c.0.s8 %v279
          %v281 = vlaneseq
          %v282 = vshrl.u32 %v281, 7
          %v283 = vsub.s32 %v280, %v282
          %v284 = vrot.slane %v276, %v283
          %v286 = vunpack.c.l.s4 1983009808
          %v287 = vunpack.c.0.s8 %v286
          %v288 = vlaneseq
          %v289 = vshrl.u32 %v288, 7
          %v290 = vsub.s32 %v287, %v289
          %v291 = vrot.slane %v277, %v290
          %v292 = vcombine.low %v284, %v291
          %294 = vst [vmem:[%s247] sm:$0xff] %v292
        $region40: #{tpu_custom_call.1} parent=27 // pred_fallthru
          _
        %p295 = scmp.eq.s32.totalorder %s36, 1
        // Predicated region
        $region41: #{tpu_custom_call.1} parent=27 // pred_check
          %p296 = pneg %p295
        $region42: #{tpu_custom_call.1} parent=27 // pred_check_branch
          %298 = sbr.rel (%p296) target = $region44
        $region43: #{tpu_custom_call.1} parent=27 // pred_region
          %v299 = vld [vmem:[%s213] sm:$0xff]
          %v301 = vlaneseq
          %v302 = vshrl.u32 %v301, 7
          %v303 = vsub.s32 0, %v302
          %v304 = vrot.slane %v254, %v303
          %v305 = vlaneseq
          %v306 = vshrl.u32 %v305, 7
          %v307 = vsub.s32 1, %v306
          %v308 = vrot.slane %v254, %v307
          %v309 = vlaneseq
          %v310 = vshrl.u32 %v309, 7
          %v311 = vsub.s32 2, %v310
          %v312 = vrot.slane %v254, %v311
          %v313 = vlaneseq
          %v314 = vshrl.u32 %v313, 7
          %v315 = vsub.s32 3, %v314
          %v316 = vrot.slane %v254, %v315
          %v317 = vcombine.low %v304, %v308
          %v318 = vcombine.low %v312, %v316
          %v320 = vunpack.c.l.s4 1983009808
          %v321 = vunpack.c.0.s8 %v320
          %v322 = vlaneseq
          %v323 = vshrl.u32 %v322, 7
          %v324 = vsub.s32 %v321, %v323
          %v325 = vrot.slane %v317, %v324
          %v327 = vunpack.c.l.s4 1983009808
          %v328 = vunpack.c.0.s8 %v327
          %v329 = vlaneseq
          %v330 = vshrl.u32 %v329, 7
          %v331 = vsub.s32 %v328, %v330
          %v332 = vrot.slane %v318, %v331
          %v333 = vcombine.low %v325, %v332
          %v335 = vsub.f32 %v299, %v333
          %336 = vst [vmem:[%s247] sm:$0xff] %v335
        $region44: #{tpu_custom_call.1} parent=27 // pred_fallthru
          _
        %s337 = sand.u32 %s127, 1
        %s338 = scalar_lea.sflag [#allocation6], %s337
        %s339 = sand.u32 %s127, 1
        %s340 = smul.addr %s339, 8
        %s341 = scalar_lea.vmem [#allocation9], %s340
        // Predicated region
        $region45: #{tpu_custom_call.1} parent=27 // pred_check
          %p342 = pneg %p137
        $region46: #{tpu_custom_call.1} parent=27 // pred_check_branch
          %344 = sbr.rel (%p342) target = $region48
        $region47: #{tpu_custom_call.1} parent=27 // pred_region
          %s345 = smul.u32 %s36, 2
          %s346 = sadd.s32 %s345, %s34
          %s347 = smul.u32 4, %s346
          %s349 = ssub.s32 128, 128
          %350 = vsyncadd %s338, %s349
          %s351 = smul.addr %s33, 16
          %s352 = sadd.s32 %s347, %s351
          %s353 = smul.addr %s35, 16
          %s354 = sadd.s32 %s352, %s353
          %s355 = smul.addr %s354, 32
          %s356 = scalar_lea.hbm %s3, %s355
          %s358 = sshll.u32 %s341, 4
          %s359 = int_to_ptr.vmem [resolvable:$true] %s358
          %361 = dma.vmem_to_hbm [thread:$0]  %s359, 128, %s356, %s338
        $region48: #{tpu_custom_call.1} parent=27 // pred_fallthru
          _
      $region28: #{tpu_custom_call.1} parent=5 // pred_fallthru
        _
      %p362 = scmp.le.s32.totalorder 2, %s22
      // Predicated region
      $region49: #{tpu_custom_call.1} parent=5 // pred_check
        %p363 = pneg %p362
      $region50: #{tpu_custom_call.1} parent=5 // pred_check_branch
        %365 = sbr.rel (%p363) target = $region52
      $region51: #{tpu_custom_call.1} parent=5 // pred_region
        %s366 = ssub.s32 %s22, 2
        // Predicated region
        $region53: #{tpu_custom_call.1} parent=51 // pred_check
          %p367 = pneg %p143
        $region54: #{tpu_custom_call.1} parent=51 // pred_check_branch
          %369 = sbr.rel (%p367) target = $region56
        $region55: #{tpu_custom_call.1} parent=51 // pred_region
          %s370 = sand.u32 %s128, 1
          %s371 = scalar_lea.sflag [#allocation6], %s370
          %s372 = sand.u32 %s128, 1
          %s373 = smul.addr %s372, 8
          %s374 = scalar_lea.vmem [#allocation9], %s373
          %375 = dma.done %s371, 128
        $region56: #{tpu_custom_call.1} parent=51 // pred_fallthru
          _
      $region52: #{tpu_custom_call.1} parent=5 // pred_fallthru
        _
    $region6: #{tpu_custom_call.1} parent=1 // loop_footer
      %s26 = sadd.s32 1, %s22
    $region7: #{tpu_custom_call.1} parent=1 // loop_footer_branch
      %21 = sbr.rel target = $region3
    $region8: #{tpu_custom_call.1} parent=1 // loop_exit
      _
    %376 = vsyncpa [#allocation5], 1
    %s377 = scalar_lea.sflag [#allocation5], 1
    %378 = vsyncpa %s377, 1
    %379 = vsyncpa [#allocation8], 1
    %s380 = scalar_lea.sflag [#allocation8], 1
    %381 = vsyncpa %s380, 1
    %382 = vsyncpa [#allocation6], 1
    %s383 = scalar_lea.sflag [#allocation6], 1
    %384 = vsyncpa %s383, 1

</llo_original>
